<compile_context>
chip_gen: v7x
topology: tpu7x:2x2x1
jax: 0.10.0
libtpu: 0.0.40
codegen_flags: <defaults>
</compile_context>

<pallas_src>
import functools

import jax
import jax.numpy as jnp
from jax.experimental import pallas as pl
from jax.experimental.pallas import tpu as pltpu


# ----------------------------------------------------------------------------
# Helpers
# ----------------------------------------------------------------------------
def _round_up(x, m):
    return ((x + m - 1) // m) * m


def _cdiv(a, b):
    return -(-a // b)


def _vmem_capacity_bytes():
    """Best-effort VMEM capacity query (v5e/v6e: 128 MiB, v7x: 64 MiB/TC)."""
    try:
        info = pltpu.get_tpu_info()
        for attr in ("vmem_capacity_bytes", "vmem_bytes", "vmem_size_bytes"):
            v = getattr(info, attr, None)
            if v:
                return int(v)
    except Exception:
        pass
    return 128 << 20


# ----------------------------------------------------------------------------
# Fused kernel
# ----------------------------------------------------------------------------
def _fused_gaussian_fc_kernel(*refs, n_core_layers: int, compute_dtype):
    """Fused forward for one batch tile.

    refs layout:
      [x_ref,
       w0_ref, b0_ref, ..., w{L-1}_ref, b{L-1}_ref,      (core layers)
       w_heads_ref, b_heads_ref,                          (fused mu|log_sigma)
       out_ref]                                           ([TB, out_pad] f32)
    """
    x_ref = refs[0]
    core = refs[1:1 + 2 * n_core_layers]
    wh_ref = refs[1 + 2 * n_core_layers]
    bh_ref = refs[2 + 2 * n_core_layers]
    out_ref = refs[3 + 2 * n_core_layers]

    # bf16 operands on the MXU, f32 accumulation; h lives only in VMEM/vregs.
    h = x_ref[...]                                        # compute_dtype
    for l in range(n_core_layers):
        w = core[2 * l][...]                              # [din_p, dout_p]
        b = core[2 * l + 1][...].astype(jnp.float32)      # [1, dout_p]
        h32 = jnp.dot(h, w, preferred_element_type=jnp.float32) + b
        h = jnp.maximum(h32, 0.0).astype(compute_dtype)

    # Both heads as a single wider (lane-dense, 128-padded) matmul.
    out = (jnp.dot(h, wh_ref[...], preferred_element_type=jnp.float32)
           + bh_ref[...].astype(jnp.float32))
    out_ref[...] = out.astype(out_ref.dtype)


# ----------------------------------------------------------------------------
# Wrapper
# ----------------------------------------------------------------------------
def gaussian_fc_forward(params, x, *, block_batch=None,
                        compute_dtype=jnp.bfloat16, single_buffer=True):
    """x: [B, in_dim] -> (mu [B, out_dim], log_sigma_square [B, out_dim])."""
    core = params["core"]
    w_mu, b_mu = params["mu"]
    w_ls, b_ls = params["log_sigma"]
    out_dim = w_mu.shape[1]
    n_layers = len(core)

    B, in_dim = x.shape
    lane = 128
    sublane = 16 if compute_dtype == jnp.bfloat16 else 8

    vmem_cap = _vmem_capacity_bytes()
    small_vmem = vmem_cap <= (64 << 20)          # v7x-class: 64 MiB per TC
    if block_batch is None:
        block_batch = 256 if small_vmem else 512  # v6e/v5e afford big tiles

    # Balanced batch tiling: padding bounded by < 1 tile; grid >= 2 on v7x
    # (when the batch allows) so the "parallel" axis shards over both TCs.
    n_tiles = max(1, _cdiv(B, block_batch))
    if small_vmem and n_tiles == 1 and B >= 2 * sublane:
        n_tiles = 2
    TB = _round_up(_cdiv(B, n_tiles), sublane)
    B_pad = n_tiles * TB

    # Pad every contraction / output width to a lane multiple (zero-fill ->
    # padded hidden units are relu(0)=0 and contribute nothing downstream).
    dims = [in_dim] + [w.shape[1] for w, _ in core]
    pdims = [_round_up(d, lane) for d in dims]
    out_pad = _round_up(2 * out_dim, lane)

    cd = compute_dtype
    # TODO(synk): in a real deployment pre-pad / pre-cast the weights once at
    # init time instead of on every forward call.
    x_p = jnp.zeros((B_pad, pdims[0]), cd).at[:B, :in_dim].set(x.astype(cd))

    def pad2(a, rows, cols):
        return jnp.pad(a, ((0, rows - a.shape[0]), (0, cols - a.shape[1])))

    def const_spec(shape):
        # Constant-index operands: fetched once; single-buffer to halve their
        # VMEM footprint (the second buffer would never be refilled).
        if single_buffer:
            return pl.BlockSpec(shape, lambda i: (0, 0),
                                pipeline_mode=pl.Buffered(1))
        return pl.BlockSpec(shape, lambda i: (0, 0))

    operands = [x_p]
    in_specs = [pl.BlockSpec((TB, pdims[0]), lambda i: (i, 0))]
    flops = 0
    weight_bytes = 0
    for l, (w, b) in enumerate(core):
        din_p, dout_p = pdims[l], pdims[l + 1]
        w_p = pad2(w, din_p, dout_p).astype(cd)
        b_p = jnp.pad(b, (0, dout_p - b.shape[0])).astype(jnp.float32).reshape(1, dout_p)
        operands += [w_p, b_p]
        in_specs += [const_spec((din_p, dout_p)), const_spec((1, dout_p))]
        flops += 2 * B_pad * din_p * dout_p
        weight_bytes += w_p.size * w_p.dtype.itemsize + b_p.size * b_p.dtype.itemsize

    # Fused + lane-padded heads: [H_pad, out_pad] with (mu | log_sigma | 0-pad).
    h_pad = pdims[-1]
    w_heads = pad2(jnp.concatenate([w_mu, w_ls], axis=1), h_pad, out_pad).astype(cd)
    b_heads = jnp.pad(jnp.concatenate([b_mu, b_ls], axis=0),
                      (0, out_pad - 2 * out_dim)).astype(jnp.float32).reshape(1, out_pad)
    operands += [w_heads, b_heads]
    in_specs += [const_spec((h_pad, out_pad)), const_spec((1, out_pad))]
    flops += 2 * B_pad * h_pad * out_pad
    weight_bytes += w_heads.size * w_heads.dtype.itemsize + b_heads.size * b_heads.dtype.itemsize

    # VMEM budget: weights (+1 or +2 buffers) + double-buffered x/out tiles +
    # a few live activation slabs + slack; clamp below physical capacity.
    x_tile_b = TB * pdims[0] * 2
    out_tile_b = TB * out_pad * 4
    act_b = TB * max(pdims + [out_pad]) * 4
    wmult = 1 if single_buffer else 2
    vmem_needed = (wmult * weight_bytes + 2 * x_tile_b + 2 * out_tile_b
                   + 4 * act_b + (4 << 20))
    vmem_limit = int(min(max(vmem_needed, 32 << 20), int(0.9 * vmem_cap)))

    bytes_accessed = (x_p.size * x_p.dtype.itemsize + weight_bytes
                      + B_pad * out_pad * 4)

    kernel = functools.partial(_fused_gaussian_fc_kernel,
                               n_core_layers=n_layers, compute_dtype=cd)

    # TODO(synk): models whose full (bf16) weight stack exceeds the VMEM budget
    # need a tiled fallback (grid over hidden/output columns with an f32
    # accumulator, reduction axis marked "arbitrary"); not needed at these sizes.
    out = pl.pallas_call(
        kernel,
        out_shape=jax.ShapeDtypeStruct((B_pad, out_pad), jnp.float32),
        grid=(B_pad // TB,),
        in_specs=in_specs,
        out_specs=pl.BlockSpec((TB, out_pad), lambda i: (i, 0)),
        compiler_params=pltpu.CompilerParams(
            dimension_semantics=("parallel",),
            vmem_limit_bytes=vmem_limit),
        cost_estimate=pl.CostEstimate(
            flops=int(flops),
            transcendentals=0,
            bytes_accessed=int(bytes_accessed)),
    )(*operands)

    out = out[:B]
    return out[:, :out_dim], out[:, out_dim:2 * out_dim]


# ----------------------------------------------------------------------------
# Parameter init (mimics torch.nn.Linear default U(-1/sqrt(fan_in), +))
# ----------------------------------------------------------------------------
def init_gaussian_fc(key, in_dim, layer_dims, out_dim, dtype=jnp.float32):
    params = {"core": []}
    dims = [in_dim] + list(layer_dims)
    keys = jax.random.split(key, len(layer_dims) + 2)
    for i, (din, dout) in enumerate(zip(dims[:-1], dims[1:])):
        kw, kb = jax.random.split(keys[i])
        bound = 1.0 / jnp.sqrt(din)
        w = jax.random.uniform(kw, (din, dout), dtype, -bound, bound)
        b = jax.random.uniform(kb, (dout,), dtype, -bound, bound)
        params["core"].append((w, b))
    h_dim = layer_dims[-1]
    for name, k in (("mu", keys[-2]), ("log_sigma", keys[-1])):
        kw, kb = jax.random.split(k)
        bound = 1.0 / jnp.sqrt(h_dim)
        params[name] = (
            jax.random.uniform(kw, (h_dim, out_dim), dtype, -bound, bound),
            jax.random.uniform(kb, (out_dim,), dtype, -bound, bound),
        )
    return params


# ----------------------------------------------------------------------------
# Main
# ----------------------------------------------------------------------------
if __name__ == "__main__":
    key = jax.random.PRNGKey(0)
    k_param, k_x = jax.random.split(key)

    batch, in_dim, layer_dims, out_dim = 8, 16, [32, 32], 8
    params = init_gaussian_fc(k_param, in_dim, layer_dims, out_dim)
    x = jax.random.normal(k_x, (batch, in_dim), dtype=jnp.float32)

    fwd = jax.jit(gaussian_fc_forward,
                  static_argnames=("block_batch", "compute_dtype", "single_buffer"))
    try:
        mu, log_sigma_square = fwd(params, x, single_buffer=True)
        jax.block_until_ready((mu, log_sigma_square))
    except Exception:
        # Fallback if pl.Buffered(1) single-buffering is rejected by this build.
        mu, log_sigma_square = fwd(params, x, single_buffer=False)
        jax.block_until_ready((mu, log_sigma_square))

    # Pure-JAX reference emulating the kernel's bf16-operand / f32-accumulate
    # math (weights + activations quantized to bf16 before each matmul).
    cd = jnp.bfloat16
    h_ref = x.astype(cd).astype(jnp.float32)
    for w, b in params["core"]:
        h32 = h_ref @ w.astype(cd).astype(jnp.float32) + b
        h_ref = jnp.maximum(h32, 0.0).astype(cd).astype(jnp.float32)
    mu_ref = h_ref @ params["mu"][0].astype(cd).astype(jnp.float32) + params["mu"][1]
    ls_ref = h_ref @ params["log_sigma"][0].astype(cd).astype(jnp.float32) + params["log_sigma"][1]

    assert mu.shape == (batch, out_dim)
    assert log_sigma_square.shape == (batch, out_dim)
    assert jnp.allclose(mu, mu_ref, atol=2e-3, rtol=2e-3), "mu mismatch"
    assert jnp.allclose(log_sigma_square, ls_ref, atol=2e-3, rtol=2e-3), "log_sigma mismatch"

    print("KERNEL_OK")
</pallas_src>

<mosaic_0001>
module attributes {stable_mosaic.version = 11 : i64} {
  func.func @_fused_gaussian_fc_kernel(%arg0: i32, %arg1: memref<16x128xbf16, #tpu.memory_space<vmem>>, %arg2: memref<128x128xbf16, #tpu.memory_space<vmem>>, %arg3: memref<1x128xf32, #tpu.memory_space<vmem>>, %arg4: memref<128x128xbf16, #tpu.memory_space<vmem>>, %arg5: memref<1x128xf32, #tpu.memory_space<vmem>>, %arg6: memref<128x128xbf16, #tpu.memory_space<vmem>>, %arg7: memref<1x128xf32, #tpu.memory_space<vmem>>, %arg8: memref<16x128xf32, #tpu.memory_space<vmem>>) attributes {dimension_semantics = [#tpu.dimension_semantics<parallel>], iteration_bounds = array<i64: 1>, scalar_prefetch = 0 : i64, scratch_operands = 0 : i64, tpu.core_type = #tpu.core_type<tc>, window_params = [{transform_indices = @transform_0, window_bounds = array<i64: 16, 128>}, {pipeline_mode = #tpu.pipeline_mode<synchronous>, transform_indices = @transform_1, window_bounds = array<i64: 128, 128>}, {pipeline_mode = #tpu.pipeline_mode<synchronous>, transform_indices = @transform_2, window_bounds = array<i64: 1, 128>}, {pipeline_mode = #tpu.pipeline_mode<synchronous>, transform_indices = @transform_3, window_bounds = array<i64: 128, 128>}, {pipeline_mode = #tpu.pipeline_mode<synchronous>, transform_indices = @transform_4, window_bounds = array<i64: 1, 128>}, {pipeline_mode = #tpu.pipeline_mode<synchronous>, transform_indices = @transform_5, window_bounds = array<i64: 128, 128>}, {pipeline_mode = #tpu.pipeline_mode<synchronous>, transform_indices = @transform_6, window_bounds = array<i64: 1, 128>}, {transform_indices = @transform_7, window_bounds = array<i64: 16, 128>}]} {
    %c0 = arith.constant 0 : index
    %c0_0 = arith.constant 0 : index
    %0 = vector.load %arg1[%c0, %c0_0] : memref<16x128xbf16, #tpu.memory_space<vmem>>, vector<16x128xbf16>
    %c0_1 = arith.constant 0 : index
    %c0_2 = arith.constant 0 : index
    %1 = vector.load %arg2[%c0_1, %c0_2] : memref<128x128xbf16, #tpu.memory_space<vmem>>, vector<128x128xbf16>
    %c0_3 = arith.constant 0 : index
    %c0_4 = arith.constant 0 : index
    %2 = vector.load %arg3[%c0_3, %c0_4] : memref<1x128xf32, #tpu.memory_space<vmem>>, vector<1x128xf32>
    %cst = arith.constant dense<0.000000e+00> : vector<16x128xf32>
    %3 = tpu.matmul %0, %1, %cst {dimension_numbers = #tpu.dot_dimension_numbers<[1], [0], [0], [1], [0, 0, 1, 1], [], []>} : vector<16x128xbf16>, vector<128x128xbf16>, vector<16x128xf32> -> vector<16x128xf32>
    %4 = vector.broadcast %2 : vector<1x128xf32> to vector<16x128xf32>
    %5 = arith.addf %3, %4 : vector<16x128xf32>
    %cst_5 = arith.constant 0.000000e+00 : f32
    %6 = vector.broadcast %cst_5 : f32 to vector<16x128xf32>
    %7 = arith.maximumf %5, %6 : vector<16x128xf32>
    %8 = arith.truncf %7 : vector<16x128xf32> to vector<16x128xbf16>
    %c0_6 = arith.constant 0 : index
    %c0_7 = arith.constant 0 : index
    %9 = vector.load %arg4[%c0_6, %c0_7] : memref<128x128xbf16, #tpu.memory_space<vmem>>, vector<128x128xbf16>
    %c0_8 = arith.constant 0 : index
    %c0_9 = arith.constant 0 : index
    %10 = vector.load %arg5[%c0_8, %c0_9] : memref<1x128xf32, #tpu.memory_space<vmem>>, vector<1x128xf32>
    %cst_10 = arith.constant dense<0.000000e+00> : vector<16x128xf32>
    %11 = tpu.matmul %8, %9, %cst_10 {dimension_numbers = #tpu.dot_dimension_numbers<[1], [0], [0], [1], [0, 0, 1, 1], [], []>} : vector<16x128xbf16>, vector<128x128xbf16>, vector<16x128xf32> -> vector<16x128xf32>
    %12 = vector.broadcast %10 : vector<1x128xf32> to vector<16x128xf32>
    %13 = arith.addf %11, %12 : vector<16x128xf32>
    %cst_11 = arith.constant 0.000000e+00 : f32
    %14 = vector.broadcast %cst_11 : f32 to vector<16x128xf32>
    %15 = arith.maximumf %13, %14 : vector<16x128xf32>
    %16 = arith.truncf %15 : vector<16x128xf32> to vector<16x128xbf16>
    %c0_12 = arith.constant 0 : index
    %c0_13 = arith.constant 0 : index
    %17 = vector.load %arg6[%c0_12, %c0_13] : memref<128x128xbf16, #tpu.memory_space<vmem>>, vector<128x128xbf16>
    %cst_14 = arith.constant dense<0.000000e+00> : vector<16x128xf32>
    %18 = tpu.matmul %16, %17, %cst_14 {dimension_numbers = #tpu.dot_dimension_numbers<[1], [0], [0], [1], [0, 0, 1, 1], [], []>} : vector<16x128xbf16>, vector<128x128xbf16>, vector<16x128xf32> -> vector<16x128xf32>
    %c0_15 = arith.constant 0 : index
    %c0_16 = arith.constant 0 : index
    %19 = vector.load %arg7[%c0_15, %c0_16] : memref<1x128xf32, #tpu.memory_space<vmem>>, vector<1x128xf32>
    %20 = vector.broadcast %19 : vector<1x128xf32> to vector<16x128xf32>
    %21 = arith.addf %18, %20 : vector<16x128xf32>
    %c0_17 = arith.constant 0 : index
    %c0_18 = arith.constant 0 : index
    %22 = vector.load %arg8[%c0_17, %c0_18] : memref<16x128xf32, #tpu.memory_space<vmem>>, vector<16x128xf32>
    tpu.vector_store %arg8[%c0_17, %c0_18], %21 {strides = array<i32>} : memref<16x128xf32, #tpu.memory_space<vmem>>, vector<16x128xf32>,
    return
  }
  func.func @transform_0(%arg0: i32) -> (i32, i32) {
    %c0_i32 = arith.constant 0 : i32
    %c0_i32_0 = arith.constant 0 : i32
    return %arg0, %c0_i32 : i32, i32
  }
  func.func @transform_1(%arg0: i32) -> (i32, i32) {
    %c0_i32 = arith.constant 0 : i32
    %c0_i32_0 = arith.constant 0 : i32
    %c0_i32_1 = arith.constant 0 : i32
    return %c0_i32, %c0_i32_0 : i32, i32
  }
  func.func @transform_2(%arg0: i32) -> (i32, i32) {
    %c0_i32 = arith.constant 0 : i32
    %c0_i32_0 = arith.constant 0 : i32
    %c0_i32_1 = arith.constant 0 : i32
    return %c0_i32, %c0_i32_0 : i32, i32
  }
  func.func @transform_3(%arg0: i32) -> (i32, i32) {
    %c0_i32 = arith.constant 0 : i32
    %c0_i32_0 = arith.constant 0 : i32
    %c0_i32_1 = arith.constant 0 : i32
    return %c0_i32, %c0_i32_0 : i32, i32
  }
  func.func @transform_4(%arg0: i32) -> (i32, i32) {
    %c0_i32 = arith.constant 0 : i32
    %c0_i32_0 = arith.constant 0 : i32
    %c0_i32_1 = arith.constant 0 : i32
    return %c0_i32, %c0_i32_0 : i32, i32
  }
  func.func @transform_5(%arg0: i32) -> (i32, i32) {
    %c0_i32 = arith.constant 0 : i32
    %c0_i32_0 = arith.constant 0 : i32
    %c0_i32_1 = arith.constant 0 : i32
    return %c0_i32, %c0_i32_0 : i32, i32
  }
  func.func @transform_6(%arg0: i32) -> (i32, i32) {
    %c0_i32 = arith.constant 0 : i32
    %c0_i32_0 = arith.constant 0 : i32
    %c0_i32_1 = arith.constant 0 : i32
    return %c0_i32, %c0_i32_0 : i32, i32
  }
  func.func @transform_7(%arg0: i32) -> (i32, i32) {
    %c0_i32 = arith.constant 0 : i32
    %c0_i32_0 = arith.constant 0 : i32
    return %arg0, %c0_i32 : i32, i32
  }
}

module attributes {stable_mosaic.version = 11 : i64} {
  func.func @_fused_gaussian_fc_kernel(%arg0: i32, %arg1: memref<16x128xbf16, #tpu.memory_space<vmem>>, %arg2: memref<128x128xbf16, #tpu.memory_space<vmem>>, %arg3: memref<1x128xf32, #tpu.memory_space<vmem>>, %arg4: memref<128x128xbf16, #tpu.memory_space<vmem>>, %arg5: memref<1x128xf32, #tpu.memory_space<vmem>>, %arg6: memref<128x128xbf16, #tpu.memory_space<vmem>>, %arg7: memref<1x128xf32, #tpu.memory_space<vmem>>, %arg8: memref<16x128xf32, #tpu.memory_space<vmem>>) attributes {dimension_semantics = [#tpu.dimension_semantics<parallel>], iteration_bounds = array<i64: 1>, scalar_prefetch = 0 : i64, scratch_operands = 0 : i64, tpu.core_type = #tpu.core_type<tc>, window_params = [{transform_indices = @transform_0, window_bounds = array<i64: 16, 128>}, {pipeline_mode = #tpu.pipeline_mode<synchronous>, transform_indices = @transform_1, window_bounds = array<i64: 128, 128>}, {pipeline_mode = #tpu.pipeline_mode<synchronous>, transform_indices = @transform_2, window_bounds = array<i64: 1, 128>}, {pipeline_mode = #tpu.pipeline_mode<synchronous>, transform_indices = @transform_3, window_bounds = array<i64: 128, 128>}, {pipeline_mode = #tpu.pipeline_mode<synchronous>, transform_indices = @transform_4, window_bounds = array<i64: 1, 128>}, {pipeline_mode = #tpu.pipeline_mode<synchronous>, transform_indices = @transform_5, window_bounds = array<i64: 128, 128>}, {pipeline_mode = #tpu.pipeline_mode<synchronous>, transform_indices = @transform_6, window_bounds = array<i64: 1, 128>}, {transform_indices = @transform_7, window_bounds = array<i64: 16, 128>}]} {
    %c0 = arith.constant 0 : index
    %c0_0 = arith.constant 0 : index
    %0 = vector.load %arg1[%c0, %c0_0] : memref<16x128xbf16, #tpu.memory_space<vmem>>, vector<16x128xbf16>
    %c0_1 = arith.constant 0 : index
    %c0_2 = arith.constant 0 : index
    %1 = vector.load %arg2[%c0_1, %c0_2] : memref<128x128xbf16, #tpu.memory_space<vmem>>, vector<128x128xbf16>
    %c0_3 = arith.constant 0 : index
    %c0_4 = arith.constant 0 : index
    %2 = vector.load %arg3[%c0_3, %c0_4] : memref<1x128xf32, #tpu.memory_space<vmem>>, vector<1x128xf32>
    %cst = arith.constant dense<0.000000e+00> : vector<16x128xf32>
    %3 = tpu.matmul %0, %1, %cst {dimension_numbers = #tpu.dot_dimension_numbers<[1], [0], [0], [1], [0, 0, 1, 1], [], []>} : vector<16x128xbf16>, vector<128x128xbf16>, vector<16x128xf32> -> vector<16x128xf32>
    %4 = vector.broadcast %2 : vector<1x128xf32> to vector<16x128xf32>
    %5 = arith.addf %3, %4 : vector<16x128xf32>
    %cst_5 = arith.constant 0.000000e+00 : f32
    %6 = vector.broadcast %cst_5 : f32 to vector<16x128xf32>
    %7 = arith.maximumf %5, %6 : vector<16x128xf32>
    %8 = arith.truncf %7 : vector<16x128xf32> to vector<16x128xbf16>
    %c0_6 = arith.constant 0 : index
    %c0_7 = arith.constant 0 : index
    %9 = vector.load %arg4[%c0_6, %c0_7] : memref<128x128xbf16, #tpu.memory_space<vmem>>, vector<128x128xbf16>
    %c0_8 = arith.constant 0 : index
    %c0_9 = arith.constant 0 : index
    %10 = vector.load %arg5[%c0_8, %c0_9] : memref<1x128xf32, #tpu.memory_space<vmem>>, vector<1x128xf32>
    %cst_10 = arith.constant dense<0.000000e+00> : vector<16x128xf32>
    %11 = tpu.matmul %8, %9, %cst_10 {dimension_numbers = #tpu.dot_dimension_numbers<[1], [0], [0], [1], [0, 0, 1, 1], [], []>} : vector<16x128xbf16>, vector<128x128xbf16>, vector<16x128xf32> -> vector<16x128xf32>
    %12 = vector.broadcast %10 : vector<1x128xf32> to vector<16x128xf32>
    %13 = arith.addf %11, %12 : vector<16x128xf32>
    %cst_11 = arith.constant 0.000000e+00 : f32
    %14 = vector.broadcast %cst_11 : f32 to vector<16x128xf32>
    %15 = arith.maximumf %13, %14 : vector<16x128xf32>
    %16 = arith.truncf %15 : vector<16x128xf32> to vector<16x128xbf16>
    %c0_12 = arith.constant 0 : index
    %c0_13 = arith.constant 0 : index
    %17 = vector.load %arg6[%c0_12, %c0_13] : memref<128x128xbf16, #tpu.memory_space<vmem>>, vector<128x128xbf16>
    %cst_14 = arith.constant dense<0.000000e+00> : vector<16x128xf32>
    %18 = tpu.matmul %16, %17, %cst_14 {dimension_numbers = #tpu.dot_dimension_numbers<[1], [0], [0], [1], [0, 0, 1, 1], [], []>} : vector<16x128xbf16>, vector<128x128xbf16>, vector<16x128xf32> -> vector<16x128xf32>
    %c0_15 = arith.constant 0 : index
    %c0_16 = arith.constant 0 : index
    %19 = vector.load %arg7[%c0_15, %c0_16] : memref<1x128xf32, #tpu.memory_space<vmem>>, vector<1x128xf32>
    %20 = vector.broadcast %19 : vector<1x128xf32> to vector<16x128xf32>
    %21 = arith.addf %18, %20 : vector<16x128xf32>
    %c0_17 = arith.constant 0 : index
    %c0_18 = arith.constant 0 : index
    %22 = vector.load %arg8[%c0_17, %c0_18] : memref<16x128xf32, #tpu.memory_space<vmem>>, vector<16x128xf32>
    tpu.vector_store %arg8[%c0_17, %c0_18], %21 {strides = array<i32>} : memref<16x128xf32, #tpu.memory_space<vmem>>, vector<16x128xf32>,
    return
  }
  func.func @transform_0(%arg0: i32) -> (i32, i32) {
    %c0_i32 = arith.constant 0 : i32
    %c0_i32_0 = arith.constant 0 : i32
    return %arg0, %c0_i32 : i32, i32
  }
  func.func @transform_1(%arg0: i32) -> (i32, i32) {
    %c0_i32 = arith.constant 0 : i32
    %c0_i32_0 = arith.constant 0 : i32
    %c0_i32_1 = arith.constant 0 : i32
    return %c0_i32, %c0_i32_0 : i32, i32
  }
  func.func @transform_2(%arg0: i32) -> (i32, i32) {
    %c0_i32 = arith.constant 0 : i32
    %c0_i32_0 = arith.constant 0 : i32
    %c0_i32_1 = arith.constant 0 : i32
    return %c0_i32, %c0_i32_0 : i32, i32
  }
  func.func @transform_3(%arg0: i32) -> (i32, i32) {
    %c0_i32 = arith.constant 0 : i32
    %c0_i32_0 = arith.constant 0 : i32
    %c0_i32_1 = arith.constant 0 : i32
    return %c0_i32, %c0_i32_0 : i32, i32
  }
  func.func @transform_4(%arg0: i32) -> (i32, i32) {
    %c0_i32 = arith.constant 0 : i32
    %c0_i32_0 = arith.constant 0 : i32
    %c0_i32_1 = arith.constant 0 : i32
    return %c0_i32, %c0_i32_0 : i32, i32
  }
  func.func @transform_5(%arg0: i32) -> (i32, i32) {
    %c0_i32 = arith.constant 0 : i32
    %c0_i32_0 = arith.constant 0 : i32
    %c0_i32_1 = arith.constant 0 : i32
    return %c0_i32, %c0_i32_0 : i32, i32
  }
  func.func @transform_6(%arg0: i32) -> (i32, i32) {
    %c0_i32 = arith.constant 0 : i32
    %c0_i32_0 = arith.constant 0 : i32
    %c0_i32_1 = arith.constant 0 : i32
    return %c0_i32, %c0_i32_0 : i32, i32
  }
  func.func @transform_7(%arg0: i32) -> (i32, i32) {
    %c0_i32 = arith.constant 0 : i32
    %c0_i32_0 = arith.constant 0 : i32
    return %arg0, %c0_i32 : i32, i32
  }
}

</mosaic_0001>

<llo_original>
// kernel: gaussian_fc_forward.1
$region0: #{gaussian_fc_forward.1}
  #allocation0 [shape = 'u32[]', space=smem, size = 0x4, offset = 0x4, fixed_abs, tag = 'smem constant byte address 0x4 - core index']
  #allocation1 [shape = 'u32[144,128]{1,0:T(1,128)}', space=vmem, size = 0x12000, scoped, tag = 'internal scratch']
  %s0 = inlined_call_operand.vmem [shape: bf16[16,128], index: 0, kind: input, shape index: {}]
  %s1 = inlined_call_operand.vmem [shape: bf16[128,128], index: 1, kind: input, shape index: {}]
  %s2 = inlined_call_operand.vmem [shape: f32[1,128], index: 2, kind: input, shape index: {}]
  %s3 = inlined_call_operand.vmem [shape: bf16[128,128], index: 3, kind: input, shape index: {}]
  %s4 = inlined_call_operand.vmem [shape: f32[1,128], index: 4, kind: input, shape index: {}]
  %s5 = inlined_call_operand.vmem [shape: bf16[128,128], index: 5, kind: input, shape index: {}]
  %s6 = inlined_call_operand.vmem [shape: f32[1,128], index: 6, kind: input, shape index: {}]
  %s7 = inlined_call_operand.vmem [shape: f32[16,128], index: 7, kind: output, shape index: {}]
  %s8 = sld [smem:[#allocation0]]
  $region38: #{gaussian_fc_forward.1} parent=0
    _
  %s10 = ssub.s32 1, %s8
  %s11 = scalar_select 0, %s10, %s8
  // Predicated region
  $region2: #{gaussian_fc_forward.1} parent=0 // pred_check
    _
  $region3: #{gaussian_fc_forward.1} parent=0 // pred_check_branch
    %13 = sbr.rel (0) target = $region5
  $region4: #{gaussian_fc_forward.1} parent=0 // pred_region
    _
  $region5: #{gaussian_fc_forward.1} parent=0 // pred_fallthru
    _
  // Predicated region
  $region6: #{gaussian_fc_forward.1} parent=0 // pred_check
    _
  $region7: #{gaussian_fc_forward.1} parent=0 // pred_check_branch
    %15 = sbr.rel (0) target = $region9
  $region8: #{gaussian_fc_forward.1} parent=0 // pred_region
    _
  $region9: #{gaussian_fc_forward.1} parent=0 // pred_fallthru
    _
  // Predicated region
  $region10: #{gaussian_fc_forward.1} parent=0 // pred_check
    _
  $region11: #{gaussian_fc_forward.1} parent=0 // pred_check_branch
    %17 = sbr.rel (0) target = $region13
  $region12: #{gaussian_fc_forward.1} parent=0 // pred_region
    _
  $region13: #{gaussian_fc_forward.1} parent=0 // pred_fallthru
    _
  // Predicated region
  $region14: #{gaussian_fc_forward.1} parent=0 // pred_check
    _
  $region15: #{gaussian_fc_forward.1} parent=0 // pred_check_branch
    %19 = sbr.rel (0) target = $region17
  $region16: #{gaussian_fc_forward.1} parent=0 // pred_region
    _
  $region17: #{gaussian_fc_forward.1} parent=0 // pred_fallthru
    _
  // Predicated region
  $region18: #{gaussian_fc_forward.1} parent=0 // pred_check
    _
  $region19: #{gaussian_fc_forward.1} parent=0 // pred_check_branch
    %21 = sbr.rel (0) target = $region21
  $region20: #{gaussian_fc_forward.1} parent=0 // pred_region
    _
  $region21: #{gaussian_fc_forward.1} parent=0 // pred_fallthru
    _
  // Predicated region
  $region22: #{gaussian_fc_forward.1} parent=0 // pred_check
    _
  $region23: #{gaussian_fc_forward.1} parent=0 // pred_check_branch
    %23 = sbr.rel (0) target = $region25
  $region24: #{gaussian_fc_forward.1} parent=0 // pred_region
    _
  $region25: #{gaussian_fc_forward.1} parent=0 // pred_fallthru
    _
  // Predicated region
  $region26: #{gaussian_fc_forward.1} parent=0 // pred_check
    _
  $region27: #{gaussian_fc_forward.1} parent=0 // pred_check_branch
    %25 = sbr.rel (0) target = $region29
  $region28: #{gaussian_fc_forward.1} parent=0 // pred_region
    _
  $region29: #{gaussian_fc_forward.1} parent=0 // pred_fallthru
    _
  %v27 = vld [vmem:[%s0] sm:$0xf]
  %v28 = vld [vmem:[%s0 + $0x4] sm:$0xf]
  %v29 = vld [vmem:[%s1] sm:$0xf]
  %v30 = vld [vmem:[%s1 + $0x4] sm:$0xf]
  %v31 = vld [vmem:[%s1 + $0x8] sm:$0xf]
  %v32 = vld [vmem:[%s1 + $0xc] sm:$0xf]
  %v33 = vld [vmem:[%s1 + $0x10] sm:$0xf]
  %v34 = vld [vmem:[%s1 + $0x14] sm:$0xf]
  %v35 = vld [vmem:[%s1 + $0x18] sm:$0xf]
  %v36 = vld [vmem:[%s1 + $0x1c] sm:$0xf]
  %v37 = vld [vmem:[%s1 + $0x20] sm:$0xf]
  %v38 = vld [vmem:[%s1 + $0x24] sm:$0xf]
  %v39 = vld [vmem:[%s1 + $0x28] sm:$0xf]
  %v40 = vld [vmem:[%s1 + $0x2c] sm:$0xf]
  %v41 = vld [vmem:[%s1 + $0x30] sm:$0xf]
  %v42 = vld [vmem:[%s1 + $0x34] sm:$0xf]
  %v43 = vld [vmem:[%s1 + $0x38] sm:$0xf]
  %v44 = vld [vmem:[%s1 + $0x3c] sm:$0xf]
  %v45 = vld [vmem:[%s2] sm:$0x1]
  %v47 = vlaneseq
  %v48 = vshrl.u32 %v47, 7
  %v49 = vsub.s32 0, %v48
  %v50 = vrot.slane %v45, %v49
  %v54 = vunpack.c.l.b16 %v27
  %v55 = vunpack.c.l.b16 %v28
  %v56 = vpack.c.b16 %v55, %v54
  %v74 = vunpack.c.l.b16 %v29
  %v75 = vunpack.c.l.b16 %v30
  %v76 = vunpack.c.l.b16 %v31
  %v77 = vunpack.c.l.b16 %v32
  %v78 = vunpack.c.l.b16 %v33
  %v79 = vunpack.c.l.b16 %v34
  %v80 = vunpack.c.l.b16 %v35
  %v81 = vunpack.c.l.b16 %v36
  %v82 = vunpack.c.l.b16 %v37
  %v83 = vunpack.c.l.b16 %v38
  %v84 = vunpack.c.l.b16 %v39
  %v85 = vunpack.c.l.b16 %v40
  %v86 = vunpack.c.l.b16 %v41
  %v87 = vunpack.c.l.b16 %v42
  %v88 = vunpack.c.l.b16 %v43
  %v89 = vunpack.c.l.b16 %v44
  %v90 = vpack.c.b16 %v75, %v74
  %v91 = vpack.c.b16 %v77, %v76
  %v92 = vpack.c.b16 %v79, %v78
  %v93 = vpack.c.b16 %v81, %v80
  %v94 = vpack.c.b16 %v83, %v82
  %v95 = vpack.c.b16 %v85, %v84
  %v96 = vpack.c.b16 %v87, %v86
  %v97 = vpack.c.b16 %v89, %v88
  %106 = vmatprep.subr.bf16.mxu0 0
  %107 = vmatpush1.bf16.msra.mxu0 %v90
  %108 = vmatprep.subr.bf16.mxu0 0
  %109 = vmatpush1.bf16.msra.mxu0 %v91
  %110 = vmatprep.subr.bf16.mxu0 0
  %111 = vmatpush1.bf16.msra.mxu0 %v92
  %112 = vmatprep.subr.bf16.mxu0 0
  %113 = vmatpush1.bf16.msra.mxu0 %v93
  %114 = vmatprep.subr.bf16.mxu0 0
  %115 = vmatpush1.bf16.msra.mxu0 %v94
  %116 = vmatprep.subr.bf16.mxu0 0
  %117 = vmatpush1.bf16.msra.mxu0 %v95
  %118 = vmatprep.subr.bf16.mxu0 0
  %119 = vmatpush1.bf16.msra.mxu0 %v96
  %120 = vmatprep.subr.bf16.mxu0 0
  %121 = vmatpush1.bf16.msra.mxu0 %v97
  %122 = vmatprep.subr.bf16.mxu0 0
  %123 = vmatpush1.bf16.msra.mxu0 0
  %124 = vmatprep.subr.bf16.mxu0 0
  %125 = vmatpush1.bf16.msra.mxu0 0
  %126 = vmatprep.subr.bf16.mxu0 0
  %127 = vmatpush1.bf16.msra.mxu0 0
  %128 = vmatprep.subr.bf16.mxu0 0
  %129 = vmatpush1.bf16.msra.mxu0 0
  %130 = vmatprep.subr.bf16.mxu0 0
  %131 = vmatpush1.bf16.msra.mxu0 0
  %132 = vmatprep.subr.bf16.mxu0 0
  %133 = vmatpush1.bf16.msra.mxu0 0
  %134 = vmatprep.subr.bf16.mxu0 0
  %135 = vmatpush1.bf16.msra.mxu0 0
  %136 = vmatprep.subr.bf16.mxu0 0
  %137 = vmatpush1.bf16.msra.mxu0 0
  %138 = vmatprep.mubr.bf16.mxu0 0
  %139 = vmatmul.mubr.bf16.gmra.mrb[0].mxu0 %v56
  %v140 = vpop.f32.mrb[0].mxu0
  %v141 = vadd.f32 %v50, %v140
  %v142 = vpop.f32.mrb[0].mxu0
  %v143 = vpop.f32.mrb[0].mxu0
  %v144 = vadd.f32 %v50, %v143
  %v145 = vpop.f32.mrb[0].mxu0
  %146 = vdwg.mxu0
  %v147 = vmax.f32 %v141, 0.0
  %v148 = vmax.f32 %v144, 0.0
  %v149 = vpack.c.bf16 %v148, %v147
  %v150 = vld [vmem:[%s3] sm:$0xf]
  %v151 = vld [vmem:[%s3 + $0x4] sm:$0xf]
  %v152 = vld [vmem:[%s3 + $0x8] sm:$0xf]
  %v153 = vld [vmem:[%s3 + $0xc] sm:$0xf]
  %v154 = vld [vmem:[%s3 + $0x10] sm:$0xf]
  %v155 = vld [vmem:[%s3 + $0x14] sm:$0xf]
  %v156 = vld [vmem:[%s3 + $0x18] sm:$0xf]
  %v157 = vld [vmem:[%s3 + $0x1c] sm:$0xf]
  %v158 = vld [vmem:[%s3 + $0x20] sm:$0xf]
  %v159 = vld [vmem:[%s3 + $0x24] sm:$0xf]
  %v160 = vld [vmem:[%s3 + $0x28] sm:$0xf]
  %v161 = vld [vmem:[%s3 + $0x2c] sm:$0xf]
  %v162 = vld [vmem:[%s3 + $0x30] sm:$0xf]
  %v163 = vld [vmem:[%s3 + $0x34] sm:$0xf]
  %v164 = vld [vmem:[%s3 + $0x38] sm:$0xf]
  %v165 = vld [vmem:[%s3 + $0x3c] sm:$0xf]
  %v166 = vld [vmem:[%s4] sm:$0x1]
  %v168 = vlaneseq
  %v169 = vshrl.u32 %v168, 7
  %v170 = vsub.s32 0, %v169
  %v171 = vrot.slane %v166, %v170
  %v189 = vunpack.c.l.b16 %v150
  %v190 = vunpack.c.l.b16 %v151
  %v191 = vunpack.c.l.b16 %v152
  %v192 = vunpack.c.l.b16 %v153
  %v193 = vunpack.c.l.b16 %v154
  %v194 = vunpack.c.l.b16 %v155
  %v195 = vunpack.c.l.b16 %v156
  %v196 = vunpack.c.l.b16 %v157
  %v197 = vunpack.c.l.b16 %v158
  %v198 = vunpack.c.l.b16 %v159
  %v199 = vunpack.c.l.b16 %v160
  %v200 = vunpack.c.l.b16 %v161
  %v201 = vunpack.c.l.b16 %v162
  %v202 = vunpack.c.l.b16 %v163
  %v203 = vunpack.c.l.b16 %v164
  %v204 = vunpack.c.l.b16 %v165
  %v205 = vpack.c.b16 %v190, %v189
  %v206 = vpack.c.b16 %v192, %v191
  %v207 = vpack.c.b16 %v194, %v193
  %v208 = vpack.c.b16 %v196, %v195
  %v209 = vpack.c.b16 %v198, %v197
  %v210 = vpack.c.b16 %v200, %v199
  %v211 = vpack.c.b16 %v202, %v201
  %v212 = vpack.c.b16 %v204, %v203
  %221 = vmatprep.subr.bf16.mxu0 0
  %222 = vmatpush1.bf16.msra.mxu0 %v205
  %223 = vmatprep.subr.bf16.mxu0 0
  %224 = vmatpush1.bf16.msra.mxu0 %v206
  %225 = vmatprep.subr.bf16.mxu0 0
  %226 = vmatpush1.bf16.msra.mxu0 %v207
  %227 = vmatprep.subr.bf16.mxu0 0
  %228 = vmatpush1.bf16.msra.mxu0 %v208
  %229 = vmatprep.subr.bf16.mxu0 0
  %230 = vmatpush1.bf16.msra.mxu0 %v209
  %231 = vmatprep.subr.bf16.mxu0 0
  %232 = vmatpush1.bf16.msra.mxu0 %v210
  %233 = vmatprep.subr.bf16.mxu0 0
  %234 = vmatpush1.bf16.msra.mxu0 %v211
  %235 = vmatprep.subr.bf16.mxu0 0
  %236 = vmatpush1.bf16.msra.mxu0 %v212
  %237 = vmatprep.subr.bf16.mxu0 0
  %238 = vmatpush1.bf16.msra.mxu0 0
  %239 = vmatprep.subr.bf16.mxu0 0
  %240 = vmatpush1.bf16.msra.mxu0 0
  %241 = vmatprep.subr.bf16.mxu0 0
  %242 = vmatpush1.bf16.msra.mxu0 0
  %243 = vmatprep.subr.bf16.mxu0 0
  %244 = vmatpush1.bf16.msra.mxu0 0
  %245 = vmatprep.subr.bf16.mxu0 0
  %246 = vmatpush1.bf16.msra.mxu0 0
  %247 = vmatprep.subr.bf16.mxu0 0
  %248 = vmatpush1.bf16.msra.mxu0 0
  %249 = vmatprep.subr.bf16.mxu0 0
  %250 = vmatpush1.bf16.msra.mxu0 0
  %251 = vmatprep.subr.bf16.mxu0 0
  %252 = vmatpush1.bf16.msra.mxu0 0
  %253 = vmatprep.mubr.bf16.mxu0 0
  %254 = vmatmul.mubr.bf16.gmra.mrb[0].mxu0 %v149
  %v255 = vpop.f32.mrb[0].mxu0
  %v256 = vadd.f32 %v171, %v255
  %v257 = vpop.f32.mrb[0].mxu0
  %v258 = vpop.f32.mrb[0].mxu0
  %v259 = vadd.f32 %v171, %v258
  %v260 = vpop.f32.mrb[0].mxu0
  %261 = vdwg.mxu0
  %v262 = vmax.f32 %v256, 0.0
  %v263 = vmax.f32 %v259, 0.0
  %v264 = vpack.c.bf16 %v263, %v262
  %v265 = vld [vmem:[%s5] sm:$0xf]
  %v266 = vld [vmem:[%s5 + $0x4] sm:$0xf]
  %v267 = vld [vmem:[%s5 + $0x8] sm:$0xf]
  %v268 = vld [vmem:[%s5 + $0xc] sm:$0xf]
  %v269 = vld [vmem:[%s5 + $0x10] sm:$0xf]
  %v270 = vld [vmem:[%s5 + $0x14] sm:$0xf]
  %v271 = vld [vmem:[%s5 + $0x18] sm:$0xf]
  %v272 = vld [vmem:[%s5 + $0x1c] sm:$0xf]
  %v273 = vld [vmem:[%s5 + $0x20] sm:$0xf]
  %v274 = vld [vmem:[%s5 + $0x24] sm:$0xf]
  %v275 = vld [vmem:[%s5 + $0x28] sm:$0xf]
  %v276 = vld [vmem:[%s5 + $0x2c] sm:$0xf]
  %v277 = vld [vmem:[%s5 + $0x30] sm:$0xf]
  %v278 = vld [vmem:[%s5 + $0x34] sm:$0xf]
  %v279 = vld [vmem:[%s5 + $0x38] sm:$0xf]
  %v280 = vld [vmem:[%s5 + $0x3c] sm:$0xf]
  %v281 = vld [vmem:[%s6] sm:$0x1]
  %v283 = vlaneseq
  %v284 = vshrl.u32 %v283, 7
  %v285 = vsub.s32 0, %v284
  %v286 = vrot.slane %v281, %v285
  %v304 = vunpack.c.l.b16 %v265
  %v305 = vunpack.c.l.b16 %v266
  %v306 = vunpack.c.l.b16 %v267
  %v307 = vunpack.c.l.b16 %v268
  %v308 = vunpack.c.l.b16 %v269
  %v309 = vunpack.c.l.b16 %v270
  %v310 = vunpack.c.l.b16 %v271
  %v311 = vunpack.c.l.b16 %v272
  %v312 = vunpack.c.l.b16 %v273
  %v313 = vunpack.c.l.b16 %v274
  %v314 = vunpack.c.l.b16 %v275
  %v315 = vunpack.c.l.b16 %v276
  %v316 = vunpack.c.l.b16 %v277
  %v317 = vunpack.c.l.b16 %v278
  %v318 = vunpack.c.l.b16 %v279
  %v319 = vunpack.c.l.b16 %v280
  %v320 = vpack.c.b16 %v305, %v304
  %v321 = vpack.c.b16 %v307, %v306
  %v322 = vpack.c.b16 %v309, %v308
  %v323 = vpack.c.b16 %v311, %v310
  %v324 = vpack.c.b16 %v313, %v312
  %v325 = vpack.c.b16 %v315, %v314
  %v326 = vpack.c.b16 %v317, %v316
  %v327 = vpack.c.b16 %v319, %v318
  %336 = vmatprep.subr.bf16.mxu0 0
  %337 = vmatpush1.bf16.msra.mxu0 %v320
  %338 = vmatprep.subr.bf16.mxu0 0
  %339 = vmatpush1.bf16.msra.mxu0 %v321
  %340 = vmatprep.subr.bf16.mxu0 0
  %341 = vmatpush1.bf16.msra.mxu0 %v322
  %342 = vmatprep.subr.bf16.mxu0 0
  %343 = vmatpush1.bf16.msra.mxu0 %v323
  %344 = vmatprep.subr.bf16.mxu0 0
  %345 = vmatpush1.bf16.msra.mxu0 %v324
  %346 = vmatprep.subr.bf16.mxu0 0
  %347 = vmatpush1.bf16.msra.mxu0 %v325
  %348 = vmatprep.subr.bf16.mxu0 0
  %349 = vmatpush1.bf16.msra.mxu0 %v326
  %350 = vmatprep.subr.bf16.mxu0 0
  %351 = vmatpush1.bf16.msra.mxu0 %v327
  %352 = vmatprep.subr.bf16.mxu0 0
  %353 = vmatpush1.bf16.msra.mxu0 0
  %354 = vmatprep.subr.bf16.mxu0 0
  %355 = vmatpush1.bf16.msra.mxu0 0
  %356 = vmatprep.subr.bf16.mxu0 0
  %357 = vmatpush1.bf16.msra.mxu0 0
  %358 = vmatprep.subr.bf16.mxu0 0
  %359 = vmatpush1.bf16.msra.mxu0 0
  %360 = vmatprep.subr.bf16.mxu0 0
  %361 = vmatpush1.bf16.msra.mxu0 0
  %362 = vmatprep.subr.bf16.mxu0 0
  %363 = vmatpush1.bf16.msra.mxu0 0
  %364 = vmatprep.subr.bf16.mxu0 0
  %365 = vmatpush1.bf16.msra.mxu0 0
  %366 = vmatprep.subr.bf16.mxu0 0
  %367 = vmatpush1.bf16.msra.mxu0 0
  %368 = vmatprep.mubr.bf16.mxu0 0
  %369 = vmatmul.mubr.bf16.gmra.mrb[0].mxu0 %v264
  %v370 = vpop.f32.mrb[0].mxu0
  %v371 = vadd.f32 %v286, %v370
  %v372 = vpop.f32.mrb[0].mxu0
  %v373 = vpop.f32.mrb[0].mxu0
  %v374 = vadd.f32 %v286, %v373
  %v375 = vpop.f32.mrb[0].mxu0
  %376 = vdwg.mxu0
  %377 = vst [vmem:[%s7] sm:$0xff] %v371
  %378 = vst [vmem:[%s7 + $0x8] sm:$0xff] %v374
  // Predicated region
  $region30: #{gaussian_fc_forward.1} parent=0 // pred_check
    _
  $region31: #{gaussian_fc_forward.1} parent=0 // pred_check_branch
    %380 = sbr.rel (0) target = $region33
  $region32: #{gaussian_fc_forward.1} parent=0 // pred_region
    _
  $region33: #{gaussian_fc_forward.1} parent=0 // pred_fallthru
    _
  // Predicated region
  $region34: #{gaussian_fc_forward.1} parent=0 // pred_check
    _
  $region35: #{gaussian_fc_forward.1} parent=0 // pred_check_branch
    %382 = sbr.rel (0) target = $region37
  $region36: #{gaussian_fc_forward.1} parent=0 // pred_region
    _
  $region37: #{gaussian_fc_forward.1} parent=0 // pred_fallthru
    _

// kernel: gaussian_fc_forward.1
$region0: #{gaussian_fc_forward.1}
  #allocation0 [shape = 'u32[]', space=smem, size = 0x4, offset = 0x4, fixed_abs, tag = 'smem constant byte address 0x4 - core index']
  #allocation1 [shape = 'u32[144,128]{1,0:T(1,128)}', space=vmem, size = 0x12000, scoped, tag = 'internal scratch']
  %s0 = inlined_call_operand.vmem [shape: bf16[16,128], index: 0, kind: input, shape index: {}]
  %s1 = inlined_call_operand.vmem [shape: bf16[128,128], index: 1, kind: input, shape index: {}]
  %s2 = inlined_call_operand.vmem [shape: f32[1,128], index: 2, kind: input, shape index: {}]
  %s3 = inlined_call_operand.vmem [shape: bf16[128,128], index: 3, kind: input, shape index: {}]
  %s4 = inlined_call_operand.vmem [shape: f32[1,128], index: 4, kind: input, shape index: {}]
  %s5 = inlined_call_operand.vmem [shape: bf16[128,128], index: 5, kind: input, shape index: {}]
  %s6 = inlined_call_operand.vmem [shape: f32[1,128], index: 6, kind: input, shape index: {}]
  %s7 = inlined_call_operand.vmem [shape: f32[16,128], index: 7, kind: output, shape index: {}]
  %s8 = sld [smem:[#allocation0]]
  $region38: #{gaussian_fc_forward.1} parent=0
    _
  %s10 = ssub.s32 1, %s8
  %s11 = scalar_select 0, %s10, %s8
  // Predicated region
  $region2: #{gaussian_fc_forward.1} parent=0 // pred_check
    _
  $region3: #{gaussian_fc_forward.1} parent=0 // pred_check_branch
    %13 = sbr.rel (0) target = $region5
  $region4: #{gaussian_fc_forward.1} parent=0 // pred_region
    _
  $region5: #{gaussian_fc_forward.1} parent=0 // pred_fallthru
    _
  // Predicated region
  $region6: #{gaussian_fc_forward.1} parent=0 // pred_check
    _
  $region7: #{gaussian_fc_forward.1} parent=0 // pred_check_branch
    %15 = sbr.rel (0) target = $region9
  $region8: #{gaussian_fc_forward.1} parent=0 // pred_region
    _
  $region9: #{gaussian_fc_forward.1} parent=0 // pred_fallthru
    _
  // Predicated region
  $region10: #{gaussian_fc_forward.1} parent=0 // pred_check
    _
  $region11: #{gaussian_fc_forward.1} parent=0 // pred_check_branch
    %17 = sbr.rel (0) target = $region13
  $region12: #{gaussian_fc_forward.1} parent=0 // pred_region
    _
  $region13: #{gaussian_fc_forward.1} parent=0 // pred_fallthru
    _
  // Predicated region
  $region14: #{gaussian_fc_forward.1} parent=0 // pred_check
    _
  $region15: #{gaussian_fc_forward.1} parent=0 // pred_check_branch
    %19 = sbr.rel (0) target = $region17
  $region16: #{gaussian_fc_forward.1} parent=0 // pred_region
    _
  $region17: #{gaussian_fc_forward.1} parent=0 // pred_fallthru
    _
  // Predicated region
  $region18: #{gaussian_fc_forward.1} parent=0 // pred_check
    _
  $region19: #{gaussian_fc_forward.1} parent=0 // pred_check_branch
    %21 = sbr.rel (0) target = $region21
  $region20: #{gaussian_fc_forward.1} parent=0 // pred_region
    _
  $region21: #{gaussian_fc_forward.1} parent=0 // pred_fallthru
    _
  // Predicated region
  $region22: #{gaussian_fc_forward.1} parent=0 // pred_check
    _
  $region23: #{gaussian_fc_forward.1} parent=0 // pred_check_branch
    %23 = sbr.rel (0) target = $region25
  $region24: #{gaussian_fc_forward.1} parent=0 // pred_region
    _
  $region25: #{gaussian_fc_forward.1} parent=0 // pred_fallthru
    _
  // Predicated region
  $region26: #{gaussian_fc_forward.1} parent=0 // pred_check
    _
  $region27: #{gaussian_fc_forward.1} parent=0 // pred_check_branch
    %25 = sbr.rel (0) target = $region29
  $region28: #{gaussian_fc_forward.1} parent=0 // pred_region
    _
  $region29: #{gaussian_fc_forward.1} parent=0 // pred_fallthru
    _
  %v27 = vld [vmem:[%s0] sm:$0xf]
  %v28 = vld [vmem:[%s0 + $0x4] sm:$0xf]
  %v29 = vld [vmem:[%s1] sm:$0xf]
  %v30 = vld [vmem:[%s1 + $0x4] sm:$0xf]
  %v31 = vld [vmem:[%s1 + $0x8] sm:$0xf]
  %v32 = vld [vmem:[%s1 + $0xc] sm:$0xf]
  %v33 = vld [vmem:[%s1 + $0x10] sm:$0xf]
  %v34 = vld [vmem:[%s1 + $0x14] sm:$0xf]
  %v35 = vld [vmem:[%s1 + $0x18] sm:$0xf]
  %v36 = vld [vmem:[%s1 + $0x1c] sm:$0xf]
  %v37 = vld [vmem:[%s1 + $0x20] sm:$0xf]
  %v38 = vld [vmem:[%s1 + $0x24] sm:$0xf]
  %v39 = vld [vmem:[%s1 + $0x28] sm:$0xf]
  %v40 = vld [vmem:[%s1 + $0x2c] sm:$0xf]
  %v41 = vld [vmem:[%s1 + $0x30] sm:$0xf]
  %v42 = vld [vmem:[%s1 + $0x34] sm:$0xf]
  %v43 = vld [vmem:[%s1 + $0x38] sm:$0xf]
  %v44 = vld [vmem:[%s1 + $0x3c] sm:$0xf]
  %v45 = vld [vmem:[%s2] sm:$0x1]
  %v47 = vlaneseq
  %v48 = vshrl.u32 %v47, 7
  %v49 = vsub.s32 0, %v48
  %v50 = vrot.slane %v45, %v49
  %v54 = vunpack.c.l.b16 %v27
  %v55 = vunpack.c.l.b16 %v28
  %v56 = vpack.c.b16 %v55, %v54
  %v74 = vunpack.c.l.b16 %v29
  %v75 = vunpack.c.l.b16 %v30
  %v76 = vunpack.c.l.b16 %v31
  %v77 = vunpack.c.l.b16 %v32
  %v78 = vunpack.c.l.b16 %v33
  %v79 = vunpack.c.l.b16 %v34
  %v80 = vunpack.c.l.b16 %v35
  %v81 = vunpack.c.l.b16 %v36
  %v82 = vunpack.c.l.b16 %v37
  %v83 = vunpack.c.l.b16 %v38
  %v84 = vunpack.c.l.b16 %v39
  %v85 = vunpack.c.l.b16 %v40
  %v86 = vunpack.c.l.b16 %v41
  %v87 = vunpack.c.l.b16 %v42
  %v88 = vunpack.c.l.b16 %v43
  %v89 = vunpack.c.l.b16 %v44
  %v90 = vpack.c.b16 %v75, %v74
  %v91 = vpack.c.b16 %v77, %v76
  %v92 = vpack.c.b16 %v79, %v78
  %v93 = vpack.c.b16 %v81, %v80
  %v94 = vpack.c.b16 %v83, %v82
  %v95 = vpack.c.b16 %v85, %v84
  %v96 = vpack.c.b16 %v87, %v86
  %v97 = vpack.c.b16 %v89, %v88
  %106 = vmatprep.subr.bf16.mxu0 0
  %107 = vmatpush1.bf16.msra.mxu0 %v90
  %108 = vmatprep.subr.bf16.mxu0 0
  %109 = vmatpush1.bf16.msra.mxu0 %v91
  %110 = vmatprep.subr.bf16.mxu0 0
  %111 = vmatpush1.bf16.msra.mxu0 %v92
  %112 = vmatprep.subr.bf16.mxu0 0
  %113 = vmatpush1.bf16.msra.mxu0 %v93
  %114 = vmatprep.subr.bf16.mxu0 0
  %115 = vmatpush1.bf16.msra.mxu0 %v94
  %116 = vmatprep.subr.bf16.mxu0 0
  %117 = vmatpush1.bf16.msra.mxu0 %v95
  %118 = vmatprep.subr.bf16.mxu0 0
  %119 = vmatpush1.bf16.msra.mxu0 %v96
  %120 = vmatprep.subr.bf16.mxu0 0
  %121 = vmatpush1.bf16.msra.mxu0 %v97
  %122 = vmatprep.subr.bf16.mxu0 0
  %123 = vmatpush1.bf16.msra.mxu0 0
  %124 = vmatprep.subr.bf16.mxu0 0
  %125 = vmatpush1.bf16.msra.mxu0 0
  %126 = vmatprep.subr.bf16.mxu0 0
  %127 = vmatpush1.bf16.msra.mxu0 0
  %128 = vmatprep.subr.bf16.mxu0 0
  %129 = vmatpush1.bf16.msra.mxu0 0
  %130 = vmatprep.subr.bf16.mxu0 0
  %131 = vmatpush1.bf16.msra.mxu0 0
  %132 = vmatprep.subr.bf16.mxu0 0
  %133 = vmatpush1.bf16.msra.mxu0 0
  %134 = vmatprep.subr.bf16.mxu0 0
  %135 = vmatpush1.bf16.msra.mxu0 0
  %136 = vmatprep.subr.bf16.mxu0 0
  %137 = vmatpush1.bf16.msra.mxu0 0
  %138 = vmatprep.mubr.bf16.mxu0 0
  %139 = vmatmul.mubr.bf16.gmra.mrb[0].mxu0 %v56
  %v140 = vpop.f32.mrb[0].mxu0
  %v141 = vadd.f32 %v50, %v140
  %v142 = vpop.f32.mrb[0].mxu0
  %v143 = vpop.f32.mrb[0].mxu0
  %v144 = vadd.f32 %v50, %v143
  %v145 = vpop.f32.mrb[0].mxu0
  %146 = vdwg.mxu0
  %v147 = vmax.f32 %v141, 0.0
  %v148 = vmax.f32 %v144, 0.0
  %v149 = vpack.c.bf16 %v148, %v147
  %v150 = vld [vmem:[%s3] sm:$0xf]
  %v151 = vld [vmem:[%s3 + $0x4] sm:$0xf]
  %v152 = vld [vmem:[%s3 + $0x8] sm:$0xf]
  %v153 = vld [vmem:[%s3 + $0xc] sm:$0xf]
  %v154 = vld [vmem:[%s3 + $0x10] sm:$0xf]
  %v155 = vld [vmem:[%s3 + $0x14] sm:$0xf]
  %v156 = vld [vmem:[%s3 + $0x18] sm:$0xf]
  %v157 = vld [vmem:[%s3 + $0x1c] sm:$0xf]
  %v158 = vld [vmem:[%s3 + $0x20] sm:$0xf]
  %v159 = vld [vmem:[%s3 + $0x24] sm:$0xf]
  %v160 = vld [vmem:[%s3 + $0x28] sm:$0xf]
  %v161 = vld [vmem:[%s3 + $0x2c] sm:$0xf]
  %v162 = vld [vmem:[%s3 + $0x30] sm:$0xf]
  %v163 = vld [vmem:[%s3 + $0x34] sm:$0xf]
  %v164 = vld [vmem:[%s3 + $0x38] sm:$0xf]
  %v165 = vld [vmem:[%s3 + $0x3c] sm:$0xf]
  %v166 = vld [vmem:[%s4] sm:$0x1]
  %v168 = vlaneseq
  %v169 = vshrl.u32 %v168, 7
  %v170 = vsub.s32 0, %v169
  %v171 = vrot.slane %v166, %v170
  %v189 = vunpack.c.l.b16 %v150
  %v190 = vunpack.c.l.b16 %v151
  %v191 = vunpack.c.l.b16 %v152
  %v192 = vunpack.c.l.b16 %v153
  %v193 = vunpack.c.l.b16 %v154
  %v194 = vunpack.c.l.b16 %v155
  %v195 = vunpack.c.l.b16 %v156
  %v196 = vunpack.c.l.b16 %v157
  %v197 = vunpack.c.l.b16 %v158
  %v198 = vunpack.c.l.b16 %v159
  %v199 = vunpack.c.l.b16 %v160
  %v200 = vunpack.c.l.b16 %v161
  %v201 = vunpack.c.l.b16 %v162
  %v202 = vunpack.c.l.b16 %v163
  %v203 = vunpack.c.l.b16 %v164
  %v204 = vunpack.c.l.b16 %v165
  %v205 = vpack.c.b16 %v190, %v189
  %v206 = vpack.c.b16 %v192, %v191
  %v207 = vpack.c.b16 %v194, %v193
  %v208 = vpack.c.b16 %v196, %v195
  %v209 = vpack.c.b16 %v198, %v197
  %v210 = vpack.c.b16 %v200, %v199
  %v211 = vpack.c.b16 %v202, %v201
  %v212 = vpack.c.b16 %v204, %v203
  %221 = vmatprep.subr.bf16.mxu0 0
  %222 = vmatpush1.bf16.msra.mxu0 %v205
  %223 = vmatprep.subr.bf16.mxu0 0
  %224 = vmatpush1.bf16.msra.mxu0 %v206
  %225 = vmatprep.subr.bf16.mxu0 0
  %226 = vmatpush1.bf16.msra.mxu0 %v207
  %227 = vmatprep.subr.bf16.mxu0 0
  %228 = vmatpush1.bf16.msra.mxu0 %v208
  %229 = vmatprep.subr.bf16.mxu0 0
  %230 = vmatpush1.bf16.msra.mxu0 %v209
  %231 = vmatprep.subr.bf16.mxu0 0
  %232 = vmatpush1.bf16.msra.mxu0 %v210
  %233 = vmatprep.subr.bf16.mxu0 0
  %234 = vmatpush1.bf16.msra.mxu0 %v211
  %235 = vmatprep.subr.bf16.mxu0 0
  %236 = vmatpush1.bf16.msra.mxu0 %v212
  %237 = vmatprep.subr.bf16.mxu0 0
  %238 = vmatpush1.bf16.msra.mxu0 0
  %239 = vmatprep.subr.bf16.mxu0 0
  %240 = vmatpush1.bf16.msra.mxu0 0
  %241 = vmatprep.subr.bf16.mxu0 0
  %242 = vmatpush1.bf16.msra.mxu0 0
  %243 = vmatprep.subr.bf16.mxu0 0
  %244 = vmatpush1.bf16.msra.mxu0 0
  %245 = vmatprep.subr.bf16.mxu0 0
  %246 = vmatpush1.bf16.msra.mxu0 0
  %247 = vmatprep.subr.bf16.mxu0 0
  %248 = vmatpush1.bf16.msra.mxu0 0
  %249 = vmatprep.subr.bf16.mxu0 0
  %250 = vmatpush1.bf16.msra.mxu0 0
  %251 = vmatprep.subr.bf16.mxu0 0
  %252 = vmatpush1.bf16.msra.mxu0 0
  %253 = vmatprep.mubr.bf16.mxu0 0
  %254 = vmatmul.mubr.bf16.gmra.mrb[0].mxu0 %v149
  %v255 = vpop.f32.mrb[0].mxu0
  %v256 = vadd.f32 %v171, %v255
  %v257 = vpop.f32.mrb[0].mxu0
  %v258 = vpop.f32.mrb[0].mxu0
  %v259 = vadd.f32 %v171, %v258
  %v260 = vpop.f32.mrb[0].mxu0
  %261 = vdwg.mxu0
  %v262 = vmax.f32 %v256, 0.0
  %v263 = vmax.f32 %v259, 0.0
  %v264 = vpack.c.bf16 %v263, %v262
  %v265 = vld [vmem:[%s5] sm:$0xf]
  %v266 = vld [vmem:[%s5 + $0x4] sm:$0xf]
  %v267 = vld [vmem:[%s5 + $0x8] sm:$0xf]
  %v268 = vld [vmem:[%s5 + $0xc] sm:$0xf]
  %v269 = vld [vmem:[%s5 + $0x10] sm:$0xf]
  %v270 = vld [vmem:[%s5 + $0x14] sm:$0xf]
  %v271 = vld [vmem:[%s5 + $0x18] sm:$0xf]
  %v272 = vld [vmem:[%s5 + $0x1c] sm:$0xf]
  %v273 = vld [vmem:[%s5 + $0x20] sm:$0xf]
  %v274 = vld [vmem:[%s5 + $0x24] sm:$0xf]
  %v275 = vld [vmem:[%s5 + $0x28] sm:$0xf]
  %v276 = vld [vmem:[%s5 + $0x2c] sm:$0xf]
  %v277 = vld [vmem:[%s5 + $0x30] sm:$0xf]
  %v278 = vld [vmem:[%s5 + $0x34] sm:$0xf]
  %v279 = vld [vmem:[%s5 + $0x38] sm:$0xf]
  %v280 = vld [vmem:[%s5 + $0x3c] sm:$0xf]
  %v281 = vld [vmem:[%s6] sm:$0x1]
  %v283 = vlaneseq
  %v284 = vshrl.u32 %v283, 7
  %v285 = vsub.s32 0, %v284
  %v286 = vrot.slane %v281, %v285
  %v304 = vunpack.c.l.b16 %v265
  %v305 = vunpack.c.l.b16 %v266
  %v306 = vunpack.c.l.b16 %v267
  %v307 = vunpack.c.l.b16 %v268
  %v308 = vunpack.c.l.b16 %v269
  %v309 = vunpack.c.l.b16 %v270
  %v310 = vunpack.c.l.b16 %v271
  %v311 = vunpack.c.l.b16 %v272
  %v312 = vunpack.c.l.b16 %v273
  %v313 = vunpack.c.l.b16 %v274
  %v314 = vunpack.c.l.b16 %v275
  %v315 = vunpack.c.l.b16 %v276
  %v316 = vunpack.c.l.b16 %v277
  %v317 = vunpack.c.l.b16 %v278
  %v318 = vunpack.c.l.b16 %v279
  %v319 = vunpack.c.l.b16 %v280
  %v320 = vpack.c.b16 %v305, %v304
  %v321 = vpack.c.b16 %v307, %v306
  %v322 = vpack.c.b16 %v309, %v308
  %v323 = vpack.c.b16 %v311, %v310
  %v324 = vpack.c.b16 %v313, %v312
  %v325 = vpack.c.b16 %v315, %v314
  %v326 = vpack.c.b16 %v317, %v316
  %v327 = vpack.c.b16 %v319, %v318
  %336 = vmatprep.subr.bf16.mxu0 0
  %337 = vmatpush1.bf16.msra.mxu0 %v320
  %338 = vmatprep.subr.bf16.mxu0 0
  %339 = vmatpush1.bf16.msra.mxu0 %v321
  %340 = vmatprep.subr.bf16.mxu0 0
  %341 = vmatpush1.bf16.msra.mxu0 %v322
  %342 = vmatprep.subr.bf16.mxu0 0
  %343 = vmatpush1.bf16.msra.mxu0 %v323
  %344 = vmatprep.subr.bf16.mxu0 0
  %345 = vmatpush1.bf16.msra.mxu0 %v324
  %346 = vmatprep.subr.bf16.mxu0 0
  %347 = vmatpush1.bf16.msra.mxu0 %v325
  %348 = vmatprep.subr.bf16.mxu0 0
  %349 = vmatpush1.bf16.msra.mxu0 %v326
  %350 = vmatprep.subr.bf16.mxu0 0
  %351 = vmatpush1.bf16.msra.mxu0 %v327
  %352 = vmatprep.subr.bf16.mxu0 0
  %353 = vmatpush1.bf16.msra.mxu0 0
  %354 = vmatprep.subr.bf16.mxu0 0
  %355 = vmatpush1.bf16.msra.mxu0 0
  %356 = vmatprep.subr.bf16.mxu0 0
  %357 = vmatpush1.bf16.msra.mxu0 0
  %358 = vmatprep.subr.bf16.mxu0 0
  %359 = vmatpush1.bf16.msra.mxu0 0
  %360 = vmatprep.subr.bf16.mxu0 0
  %361 = vmatpush1.bf16.msra.mxu0 0
  %362 = vmatprep.subr.bf16.mxu0 0
  %363 = vmatpush1.bf16.msra.mxu0 0
  %364 = vmatprep.subr.bf16.mxu0 0
  %365 = vmatpush1.bf16.msra.mxu0 0
  %366 = vmatprep.subr.bf16.mxu0 0
  %367 = vmatpush1.bf16.msra.mxu0 0
  %368 = vmatprep.mubr.bf16.mxu0 0
  %369 = vmatmul.mubr.bf16.gmra.mrb[0].mxu0 %v264
  %v370 = vpop.f32.mrb[0].mxu0
  %v371 = vadd.f32 %v286, %v370
  %v372 = vpop.f32.mrb[0].mxu0
  %v373 = vpop.f32.mrb[0].mxu0
  %v374 = vadd.f32 %v286, %v373
  %v375 = vpop.f32.mrb[0].mxu0
  %376 = vdwg.mxu0
  %377 = vst [vmem:[%s7] sm:$0xff] %v371
  %378 = vst [vmem:[%s7 + $0x8] sm:$0xff] %v374
  // Predicated region
  $region30: #{gaussian_fc_forward.1} parent=0 // pred_check
    _
  $region31: #{gaussian_fc_forward.1} parent=0 // pred_check_branch
    %380 = sbr.rel (0) target = $region33
  $region32: #{gaussian_fc_forward.1} parent=0 // pred_region
    _
  $region33: #{gaussian_fc_forward.1} parent=0 // pred_fallthru
    _
  // Predicated region
  $region34: #{gaussian_fc_forward.1} parent=0 // pred_check
    _
  $region35: #{gaussian_fc_forward.1} parent=0 // pred_check_branch
    %382 = sbr.rel (0) target = $region37
  $region36: #{gaussian_fc_forward.1} parent=0 // pred_region
    _
  $region37: #{gaussian_fc_forward.1} parent=0 // pred_fallthru
    _

</llo_original>
